<compile_context>
chip_gen: v6e
topology: v6e:2x2x1
jax: 0.10.0
libtpu: 0.0.40
codegen_flags: <defaults>
</compile_context>

<pallas_src>
import jax
import jax.numpy as jnp
from jax.experimental import pallas as pl
from jax.experimental.pallas import tpu as pltpu


def _round_up(a, m):
    return ((a + m - 1) // m) * m


def _largest_divisor_tile(dim, base, cap):
    """Largest multiple of `base` that divides `dim` and is <= cap.

    `dim` must itself be a multiple of `base`."""
    best = base
    t = base
    while t <= min(dim, cap):
        if dim % t == 0:
            best = t
        t += base
    return best


# ----------------------------- kernel bodies ------------------------------ #

def _mm_kernel_single_k(x_ref, w_ref, o_ref):
    """Whole contraction fits in one K tile: no accumulator, no pl.when."""
    o_ref[...] = jnp.dot(x_ref[...], w_ref[...],
                         preferred_element_type=jnp.float32).astype(o_ref.dtype)


def _mm_kernel_acc_in_output(x_ref, w_ref, o_ref):
    """Multi-K, f32 output: accumulate directly into the resident out block."""
    @pl.when(pl.program_id(2) == 0)
    def _():
        o_ref[...] = jnp.zeros_like(o_ref)

    o_ref[...] += jnp.dot(x_ref[...], w_ref[...],
                          preferred_element_type=jnp.float32)


def _mm_kernel_scratch_acc(x_ref, w_ref, o_ref, acc_ref):
    """Multi-K, non-f32 output: f32 VMEM accumulator, cast on the last step."""
    @pl.when(pl.program_id(2) == 0)
    def _():
        acc_ref[...] = jnp.zeros_like(acc_ref)

    acc_ref[...] += jnp.dot(x_ref[...], w_ref[...],
                            preferred_element_type=jnp.float32)

    @pl.when(pl.program_id(2) == pl.num_programs(2) - 1)
    def _():
        o_ref[...] = acc_ref[...].astype(o_ref.dtype)


# ----------------------------- weight prep -------------------------------- #

def prepare_prototype_weights(weights, *, weight_dtype=jnp.bfloat16):
    """One-time weight preparation (do NOT run per forward step).

    weights: list of (k_i, D) arrays in PyTorch nn.Linear layout (out, in).
    Returns (w_pad, head_sizes, head_offsets):
      w_pad        : (Dp, Kp) `weight_dtype`; each head pre-transposed, its K
                     padded to a multiple of 128, D padded to a multiple of
                     128, all heads concatenated along K.
      head_sizes   : original k_i per head.
      head_offsets : column offset of each head inside the padded slab.
    """
    D = int(weights[0].shape[1])
    Dp = _round_up(D, 128)
    cols, head_sizes, head_offsets, off = [], [], [], 0
    for w in weights:
        k, d = int(w.shape[0]), int(w.shape[1])
        assert d == D, "all heads must share output_dim"
        kp = _round_up(k, 128)
        wt = jnp.transpose(w, (1, 0)).astype(weight_dtype)       # (D, k)
        wt = jnp.pad(wt, ((0, Dp - D), (0, kp - k)))
        cols.append(wt)
        head_sizes.append(k)
        head_offsets.append(off)
        off += kp
    w_pad = jnp.concatenate(cols, axis=1)                        # (Dp, Kp)
    return w_pad, head_sizes, head_offsets


# ----------------------------- matmul wrapper ------------------------------ #

def multi_prototypes_matmul(x, w_pad, *, out_dtype=jnp.float32,
                            tm_cap=256, tn_cap=1024, tk_cap=512):
    """x: (M, D) activations; w_pad: (Dp, Kp) prepared weights.

    Returns the padded (Mp, Kp) output slab; consumers holding the head
    offsets can index it directly with no extra copies.
    """
    M, D = x.shape
    Dp, Kp = w_pad.shape
    assert Dp >= D and Dp % 128 == 0 and Kp % 128 == 0

    # Tile sizes: lane dims are multiples of 128 and exact divisors of the
    # prep-padded dims; sublane (tm) a multiple of 16 for bf16 packing.
    tm = min(_round_up(M, 16), tm_cap)
    Mp = _round_up(M, tm)
    tn = _largest_divisor_tile(Kp, 128, tn_cap)
    tk = _largest_divisor_tile(Dp, 128, tk_cap)

    # v7x megacore: keep >=2 "parallel" tiles when possible so the second
    # TensorCore has work even when M fits in a single tile.
    if Mp // tm == 1 and Kp // tn == 1 and tn >= 256:
        tn = _largest_divisor_tile(Kp, 128, tn // 2)

    n_k = Dp // tk

    # bf16 (prep dtype) activations; pad rows/cols per call — x is tiny next
    # to the weight slab (and D == Dp in the common D=128 case).
    xb = x.astype(w_pad.dtype)
    if (Mp, Dp) != (M, D):
        xb = jnp.pad(xb, ((0, Mp - M), (0, Dp - D)))

    use_scratch = (n_k > 1) and (jnp.dtype(out_dtype) != jnp.float32)

    if n_k == 1:
        kernel = _mm_kernel_single_k
        grid = (Mp // tm, Kp // tn)
        in_specs = [pl.BlockSpec((tm, tk), lambda i, j: (i, 0)),
                    pl.BlockSpec((tk, tn), lambda i, j: (0, j))]
        out_specs = pl.BlockSpec((tm, tn), lambda i, j: (i, j))
        scratch_shapes = []
        dim_sem = ("parallel", "parallel")
    else:
        kernel = _mm_kernel_scratch_acc if use_scratch else _mm_kernel_acc_in_output
        grid = (Mp // tm, Kp // tn, n_k)
        # TODO(synk): if weight-stream DMA is still exposed in a profile at
        # large Kp, add pipeline_mode=pl.Buffered(3) on the w BlockSpec.
        in_specs = [pl.BlockSpec((tm, tk), lambda i, j, k: (i, k)),
                    pl.BlockSpec((tk, tn), lambda i, j, k: (k, j))]
        out_specs = pl.BlockSpec((tm, tn), lambda i, j, k: (i, j))
        scratch_shapes = [pltpu.VMEM((tm, tn), jnp.float32)] if use_scratch else []
        dim_sem = ("parallel", "parallel", "arbitrary")

    # VMEM budget: double-buffered inputs + output (+ optional accumulator),
    # with headroom; stays under v7x's 64 MiB physical VMEM.
    in_itemsize = jnp.dtype(w_pad.dtype).itemsize
    out_itemsize = jnp.dtype(out_dtype).itemsize
    needed = (2 * tm * tk * in_itemsize          # x tiles (double-buffered)
              + 2 * tk * tn * in_itemsize        # w tiles (double-buffered)
              + 2 * tm * tn * out_itemsize       # output tiles
              + (tm * tn * 4 if use_scratch else 0))
    vmem_limit = int(min(48 << 20, max(32 << 20, 2 * needed)))

    out_pad = pl.pallas_call(
        kernel,
        out_shape=jax.ShapeDtypeStruct((Mp, Kp), out_dtype),
        grid_spec=pltpu.PrefetchScalarGridSpec(
            num_scalar_prefetch=0,
            grid=grid,
            in_specs=in_specs,
            out_specs=out_specs,
            scratch_shapes=scratch_shapes,
        ),
        compiler_params=pltpu.CompilerParams(
            dimension_semantics=dim_sem,
            vmem_limit_bytes=vmem_limit),
    )(xb, w_pad)
    return out_pad


def split_heads(out_pad, head_sizes, head_offsets, batch):
    """Lazy per-head split matching MultiPrototypes.forward's output list.

    NOTE: each slice materializes a copy; latency-critical consumers should
    instead index the padded slab with `head_offsets` directly.
    """
    return [out_pad[:batch, off:off + k]
            for k, off in zip(head_sizes, head_offsets)]


def multi_prototypes_forward(x, prepared, *, out_dtype=jnp.float32):
    """Drop-in forward matching the PyTorch module: returns [ (B, k_i), ... ]."""
    w_pad, head_sizes, head_offsets = prepared
    out_pad = multi_prototypes_matmul(x, w_pad, out_dtype=out_dtype)
    return split_heads(out_pad, head_sizes, head_offsets, x.shape[0])


# --------------------------------- demo ----------------------------------- #

if __name__ == "__main__":
    key = jax.random.PRNGKey(0)

    # ---- Case 1: single-K-step path (D=128), mixed head sizes -------------
    B, D = 64, 128
    nmb_prototypes = [256, 128, 64]           # 64 exercises per-head K padding
    kx, *kws = jax.random.split(key, 1 + len(nmb_prototypes))
    x = jax.random.normal(kx, (B, D), jnp.float32)
    weights = [0.1 * jax.random.normal(k, (p, D), jnp.float32)
               for k, p in zip(kws, nmb_prototypes)]

    prepared = prepare_prototype_weights(weights)         # one-time prep
    outs = jax.block_until_ready(multi_prototypes_forward(x, prepared))

    ref_bf16 = [jnp.dot(x.astype(jnp.bfloat16),
                        jnp.transpose(w, (1, 0)).astype(jnp.bfloat16),
                        preferred_element_type=jnp.float32) for w in weights]
    ref_f32 = [jnp.dot(x, jnp.transpose(w, (1, 0))) for w in weights]
    assert len(outs) == len(nmb_prototypes)
    for o, p, rb, rf in zip(outs, nmb_prototypes, ref_bf16, ref_f32):
        assert o.shape == (B, p) and o.dtype == jnp.float32
        assert jnp.allclose(o, rb, atol=2e-3, rtol=2e-3)
        assert jnp.allclose(o, rf, atol=5e-2, rtol=5e-2)

    # ---- Case 2: multi-K-step path (D=1024), f32 and bf16 outputs ---------
    B2, D2 = 48, 1024
    protos2 = [384, 96]
    _, kx2, kw0, kw1 = jax.random.split(jax.random.PRNGKey(0), 4)
    x2 = jax.random.normal(kx2, (B2, D2), jnp.float32)
    weights2 = [0.05 * jax.random.normal(kk, (p, D2), jnp.float32)
                for kk, p in zip((kw0, kw1), protos2)]
    prepared2 = prepare_prototype_weights(weights2)

    ref2 = [jnp.dot(x2.astype(jnp.bfloat16),
                    jnp.transpose(w, (1, 0)).astype(jnp.bfloat16),
                    preferred_element_type=jnp.float32) for w in weights2]

    outs2_f32 = jax.block_until_ready(
        multi_prototypes_forward(x2, prepared2, out_dtype=jnp.float32))
    for o, p, r in zip(outs2_f32, protos2, ref2):
        assert o.shape == (B2, p)
        assert jnp.allclose(o, r, atol=5e-3, rtol=5e-3)

    outs2_bf16 = jax.block_until_ready(
        multi_prototypes_forward(x2, prepared2, out_dtype=jnp.bfloat16))
    for o, p, r in zip(outs2_bf16, protos2, ref2):
        assert o.shape == (B2, p) and o.dtype == jnp.bfloat16
        assert jnp.allclose(o.astype(jnp.float32), r, atol=6e-2, rtol=2e-2)

    print("KERNEL_OK")
</pallas_src>

<mosaic_0001>
module attributes {stable_mosaic.version = 11 : i64} {
  func.func @_mm_kernel_single_k(%arg0: i32, %arg1: i32, %arg2: memref<64x128xbf16, #tpu.memory_space<vmem>>, %arg3: memref<128x256xbf16, #tpu.memory_space<vmem>>, %arg4: memref<64x256xf32, #tpu.memory_space<vmem>>) attributes {dimension_semantics = [#tpu.dimension_semantics<parallel>, #tpu.dimension_semantics<parallel>], iteration_bounds = array<i64: 1, 2>, scalar_prefetch = 0 : i64, scratch_operands = 0 : i64, tpu.core_type = #tpu.core_type<tc>, window_params = [{transform_indices = @transform_0, window_bounds = array<i64: 64, 128>}, {transform_indices = @transform_1, window_bounds = array<i64: 128, 256>}, {transform_indices = @transform_2, window_bounds = array<i64: 64, 256>}]} {
    %c0 = arith.constant 0 : index
    %c0_0 = arith.constant 0 : index
    %0 = vector.load %arg2[%c0, %c0_0] : memref<64x128xbf16, #tpu.memory_space<vmem>>, vector<64x128xbf16>
    %c0_1 = arith.constant 0 : index
    %c0_2 = arith.constant 0 : index
    %1 = vector.load %arg3[%c0_1, %c0_2] : memref<128x256xbf16, #tpu.memory_space<vmem>>, vector<128x256xbf16>
    %cst = arith.constant dense<0.000000e+00> : vector<64x256xf32>
    %2 = tpu.matmul %0, %1, %cst {dimension_numbers = #tpu.dot_dimension_numbers<[1], [0], [0], [1], [0, 0, 1, 1], [], []>} : vector<64x128xbf16>, vector<128x256xbf16>, vector<64x256xf32> -> vector<64x256xf32>
    %c0_3 = arith.constant 0 : index
    %c0_4 = arith.constant 0 : index
    %3 = vector.load %arg4[%c0_3, %c0_4] : memref<64x256xf32, #tpu.memory_space<vmem>>, vector<64x256xf32>
    tpu.vector_store %arg4[%c0_3, %c0_4], %2 {strides = array<i32>} : memref<64x256xf32, #tpu.memory_space<vmem>>, vector<64x256xf32>,
    return
  }
  func.func @transform_0(%arg0: i32, %arg1: i32) -> (i32, i32) {
    %c0_i32 = arith.constant 0 : i32
    %c0_i32_0 = arith.constant 0 : i32
    return %arg0, %c0_i32 : i32, i32
  }
  func.func @transform_1(%arg0: i32, %arg1: i32) -> (i32, i32) {
    %c0_i32 = arith.constant 0 : i32
    %c0_i32_0 = arith.constant 0 : i32
    return %c0_i32, %arg1 : i32, i32
  }
  func.func @transform_2(%arg0: i32, %arg1: i32) -> (i32, i32) {
    %c0_i32 = arith.constant 0 : i32
    return %arg0, %arg1 : i32, i32
  }
}

</mosaic_0001>

<llo_original>
// kernel: tpu_custom_call.1
$region0: #{tpu_custom_call.1}
  #allocation0 [shape = 'u32[]', space=smem, size = 0x4, offset = 0x4, fixed_abs, tag = 'smem constant byte address 0x4 - core index']
  #allocation1 [shape = 'u32[144,128]{1,0:T(1,128)}', space=vmem, size = 0x12000, scoped, tag = 'internal scratch']
  %s0 = inlined_call_operand.hbm [shape: bf16[64,128], index: 0, kind: input, shape index: {}]
  %s1 = inlined_call_operand.hbm [shape: bf16[128,512], index: 1, kind: input, shape index: {}]
  %s2 = inlined_call_operand.hbm [shape: f32[64,512], index: 2, kind: output, shape index: {}]
  %s3 = sld [smem:[#allocation0]]
  $region49: #{tpu_custom_call.1} parent=0
    _
  %s5 = ssub.s32 1, %s3
  %s6 = scalar_select 0, %s5, %s3
  $region1: #{tpu_custom_call.1} parent=0
    #allocation2 [shape = 'u8[16384]{0}', space=vmem, size = 0x4000, scoped, tag = 'input window, operand 0, single buffered']
    #allocation3 [shape = 's32[2]{0}', space=sflag, size = 0x8, scoped, tag = 'scoped memory for tpu_custom_call.1']
    #allocation4 [shape = 's32[2]{0}', space=sflag, size = 0x8, scoped, tag = 'scoped memory for tpu_custom_call.1']
    #allocation5 [shape = 'u8[131072]{0}', space=vmem, size = 0x20000, scoped, tag = 'input window, operand 1']
    #allocation6 [shape = 's32[2]{0}', space=sflag, size = 0x8, scoped, tag = 'scoped memory for tpu_custom_call.1']
    #allocation7 [shape = 'u8[131072]{0}', space=vmem, size = 0x20000, scoped, tag = 'output window, operand 0']
    %7 = vsyncpa [#allocation3], 0
    %8 = vsyncpa [#allocation6], 0
    %s9 = scalar_lea.sflag [#allocation6], 1
    %10 = vsyncpa %s9, 0
    %11 = vsyncpa [#allocation4], 0
    %s12 = scalar_lea.sflag [#allocation4], 1
    %13 = vsyncpa %s12, 0
    loop: start=0, step=1, limit=4
    $region2: #{tpu_custom_call.1} parent=1 // loop_pre_header
      _
    $region3: #{tpu_custom_call.1} parent=1 // loop_header
      %s15 = sphi 0, %s19
      %p16 = scmp.ge.s32.totalorder %s15, 4
      %s22 = sphi 0, %s34
      %s23 = sphi 0, %s30
      %s24 = sphi 0, %s22
      %s25 = sphi 0, %s23
      %s26 = sphi 0, %s24
      %s27 = sphi 0, %s25
      %s37 = sphi 0, %s39
      %s40 = sphi 0, %s37
      %s41 = sphi 0, %s40
      %s57 = sphi 0, %s41
      %s63 = sphi 0, %s65
      %s66 = sphi 0, %s63
      %s67 = sphi 0, %s66
      %s83 = sphi 0, %s67
      %s91 = sphi 0, %s93
      %s94 = sphi 0, %s91
      %s95 = sphi 0, %s94
      %s111 = sphi 0, %s95
    $region4: #{tpu_custom_call.1} parent=1 // loop_header_branch
      %18 = sbr.rel (%p16) target = $region8
    $region5: #{tpu_custom_call.1} parent=1 // loop_body
      %s20 = ssub.s32 %s15, 1
      %s21 = ssub.s32 %s15, 2
      %s28 = sadd.s32 1, %s23
      %p29 = scmp.ge.s32.totalorder %s28, 2
      %s30 = scalar_select %p29, 0, %s28
      %s31 = sadd.s32 1, %s22
      %s32 = scalar_select %p29, %s31, %s22
      %p33 = scmp.ge.s32.totalorder %s32, 1
      %s34 = scalar_select %p33, 0, %s32
      %s35 = ssub.s32 %s22, %s34
      %p36 = scmp.eq.s32.totalorder %s35, 0
      %s38 = sadd.s32 %s37, 1
      %s39 = scalar_select %p36, %s37, %s38
      %p42 = pneg %p36
      %p43 = scmp.eq.s32.totalorder %s15, 1
      %p44 = por %p42, %p43
      %p45 = scmp.ne.s32.totalorder %s37, %s40
      %p46 = scmp.eq.s32.totalorder %s15, 0
      %p47 = por %p45, %p46
      %p48 = scmp.ne.s32.totalorder %s37, %s40
      %p49 = scmp.eq.s32.totalorder %s20, 1
      %p50 = por %p48, %p49
      %p51 = scmp.ne.s32.totalorder %s40, %s41
      %p52 = scmp.eq.s32.totalorder %s20, 0
      %p53 = por %p51, %p52
      %p54 = scmp.ne.s32.totalorder %s40, %s41
      %p55 = scmp.eq.s32.totalorder %s21, 1
      %p56 = por %p54, %p55
      %p58 = scmp.ne.s32.totalorder %s41, %s57
      %p59 = scmp.eq.s32.totalorder %s21, 0
      %p60 = por %p58, %p59
      %s61 = ssub.s32 %s23, %s30
      %p62 = scmp.eq.s32.totalorder %s61, 0
      %s64 = sadd.s32 %s63, 1
      %s65 = scalar_select %p62, %s63, %s64
      %p68 = pneg %p62
      %p69 = scmp.eq.s32.totalorder %s15, 1
      %p70 = por %p68, %p69
      %p71 = scmp.ne.s32.totalorder %s63, %s66
      %p72 = scmp.eq.s32.totalorder %s15, 0
      %p73 = por %p71, %p72
      %p74 = scmp.ne.s32.totalorder %s63, %s66
      %p75 = scmp.eq.s32.totalorder %s20, 1
      %p76 = por %p74, %p75
      %p77 = scmp.ne.s32.totalorder %s66, %s67
      %p78 = scmp.eq.s32.totalorder %s20, 0
      %p79 = por %p77, %p78
      %p80 = scmp.ne.s32.totalorder %s66, %s67
      %p81 = scmp.eq.s32.totalorder %s21, 1
      %p82 = por %p80, %p81
      %p84 = scmp.ne.s32.totalorder %s67, %s83
      %p85 = scmp.eq.s32.totalorder %s21, 0
      %p86 = por %p84, %p85
      %s87 = ssub.s32 %s22, %s34
      %s88 = ssub.s32 %s23, %s30
      %s89 = sor.u32 %s87, %s88
      %p90 = scmp.eq.s32.totalorder %s89, 0
      %s92 = sadd.s32 %s91, 1
      %s93 = scalar_select %p90, %s91, %s92
      %p96 = pneg %p90
      %p97 = scmp.eq.s32.totalorder %s15, 1
      %p98 = por %p96, %p97
      %p99 = scmp.ne.s32.totalorder %s91, %s94
      %p100 = scmp.eq.s32.totalorder %s15, 0
      %p101 = por %p99, %p100
      %p102 = scmp.ne.s32.totalorder %s91, %s94
      %p103 = scmp.eq.s32.totalorder %s20, 1
      %p104 = por %p102, %p103
      %p105 = scmp.ne.s32.totalorder %s94, %s95
      %p106 = scmp.eq.s32.totalorder %s20, 0
      %p107 = por %p105, %p106
      %p108 = scmp.ne.s32.totalorder %s94, %s95
      %p109 = scmp.eq.s32.totalorder %s21, 1
      %p110 = por %p108, %p109
      %p112 = scmp.ne.s32.totalorder %s95, %s111
      %p113 = scmp.eq.s32.totalorder %s21, 0
      %p114 = por %p112, %p113
      %p115 = scmp.le.s32.totalorder 1, %s15
      %p116 = scmp.lt.s32.totalorder %s15, 3
      %p117 = pnand %p115, %p116
      %p118 = pneg %p117
      // Predicated region
      $region9: #{tpu_custom_call.1} parent=5 // pred_check
        _
      $region10: #{tpu_custom_call.1} parent=5 // pred_check_branch
        %120 = sbr.rel (%p117) target = $region12
      $region11: #{tpu_custom_call.1} parent=5 // pred_region
        %s121 = ssub.s32 %s15, 1
        // Predicated region
        $region13: #{tpu_custom_call.1} parent=11 // pred_check
          %p122 = pneg %p53
        $region14: #{tpu_custom_call.1} parent=11 // pred_check_branch
          %124 = sbr.rel (%p122) target = $region16
        $region15: #{tpu_custom_call.1} parent=11 // pred_region
          %s125 = smul.u32 8, %s24
          %s127 = ssub.s32 512, 512
          %128 = vsyncadd [#allocation3], %s127
          %s129 = smul.addr %s125, 64
          %s130 = scalar_lea.hbm %s0, %s129
          %s131 = sshll.u32 [#allocation2], 4
          %s132 = int_to_ptr.vmem [resolvable:$true] %s131
          %137 = dma.hbm_to_vmem [thread:$0]  %s130, 512, %s132, [#allocation3], 64, 64, 4
        $region16: #{tpu_custom_call.1} parent=11 // pred_fallthru
          _
      $region12: #{tpu_custom_call.1} parent=5 // pred_fallthru
        _
      %p138 = scmp.lt.s32.totalorder %s15, 2
      // Predicated region
      $region17: #{tpu_custom_call.1} parent=5 // pred_check
        %p139 = pneg %p138
      $region18: #{tpu_custom_call.1} parent=5 // pred_check_branch
        %141 = sbr.rel (%p139) target = $region20
      $region19: #{tpu_custom_call.1} parent=5 // pred_region
        // Predicated region
        $region21: #{tpu_custom_call.1} parent=19 // pred_check
          %p142 = pneg %p73
        $region22: #{tpu_custom_call.1} parent=19 // pred_check_branch
          %144 = sbr.rel (%p142) target = $region24
        $region23: #{tpu_custom_call.1} parent=19 // pred_region
          %s145 = sand.u32 %s63, 1
          %s146 = scalar_lea.sflag [#allocation6], %s145
          %s147 = sand.u32 %s63, 1
          %s148 = smul.addr %s147, 128
          %s149 = scalar_lea.vmem [#allocation5], %s148
          %s150 = smul.u32 2, %s23
          %s152 = ssub.s32 2048, 2048
          %153 = vsyncadd %s146, %s152
          %s154 = smul.addr %s150, 64
          %s155 = scalar_lea.hbm %s1, %s154
          %s156 = sshll.u32 %s149, 4
          %s157 = int_to_ptr.vmem [resolvable:$true] %s156
          %162 = dma.hbm_to_vmem [thread:$0]  %s155, 2048, %s157, %s146, 256, 128, 8
        $region24: #{tpu_custom_call.1} parent=19 // pred_fallthru
          _
      $region20: #{tpu_custom_call.1} parent=5 // pred_fallthru
        _
      %p163 = scmp.le.s32.totalorder 1, %s15
      %p164 = scmp.lt.s32.totalorder %s15, 3
      %p165 = pnand %p163, %p164
      %p166 = pneg %p165
      // Predicated region
      $region25: #{tpu_custom_call.1} parent=5 // pred_check
        _
      $region26: #{tpu_custom_call.1} parent=5 // pred_check_branch
        %168 = sbr.rel (%p165) target = $region28
      $region27: #{tpu_custom_call.1} parent=5 // pred_region
        %s169 = ssub.s32 %s15, 1
        // Predicated region
        $region29: #{tpu_custom_call.1} parent=27 // pred_check
          %p170 = pneg %p53
        $region30: #{tpu_custom_call.1} parent=27 // pred_check_branch
          %172 = sbr.rel (%p170) target = $region32
        $region31: #{tpu_custom_call.1} parent=27 // pred_region
          %173 = dma.done [#allocation3], 512
        $region32: #{tpu_custom_call.1} parent=27 // pred_fallthru
          _
        %s174 = sand.u32 %s66, 1
        %s175 = scalar_lea.sflag [#allocation6], %s174
        %s176 = sand.u32 %s66, 1
        %s177 = smul.addr %s176, 128
        %s178 = scalar_lea.vmem [#allocation5], %s177
        // Predicated region
        $region33: #{tpu_custom_call.1} parent=27 // pred_check
          %p179 = pneg %p79
        $region34: #{tpu_custom_call.1} parent=27 // pred_check_branch
          %181 = sbr.rel (%p179) target = $region36
        $region35: #{tpu_custom_call.1} parent=27 // pred_region
          %182 = dma.done %s175, 2048
        $region36: #{tpu_custom_call.1} parent=27 // pred_fallthru
          _
        %p183 = pneg %p53
        %p184 = pneg %p50
        %s185 = sand.u32 %s66, 1
        %s186 = scalar_lea.sflag [#allocation6], %s185
        %s187 = sand.u32 %s66, 1
        %s188 = smul.addr %s187, 128
        %s189 = scalar_lea.vmem [#allocation5], %s188
        %p190 = pneg %p79
        %p191 = pneg %p76
        %p192 = pneg %p107
        %p193 = pneg %p104
        %s194 = sand.u32 %s94, 1
        %s195 = scalar_lea.sflag [#allocation4], %s194
        %s196 = sand.u32 %s94, 1
        %s197 = smul.addr %s196, 128
        %s198 = scalar_lea.vmem [#allocation7], %s197
        %s199 = smul.u32 8, %s24
        %s200 = smul.u32 2, %s25
        %s201 = smul.u32 8, %s24
        %s202 = smul.u32 2, %s25
        %v204 = vld [vmem:[#allocation2] sm:$0xf]
        %v205 = vld [vmem:[#allocation2 + $0x4] sm:$0xf]
        %v206 = vld [vmem:[#allocation2 + $0x8] sm:$0xf]
        %v207 = vld [vmem:[#allocation2 + $0xc] sm:$0xf]
        %v208 = vld [vmem:[#allocation2 + $0x10] sm:$0xf]
        %v209 = vld [vmem:[#allocation2 + $0x14] sm:$0xf]
        %v210 = vld [vmem:[#allocation2 + $0x18] sm:$0xf]
        %v211 = vld [vmem:[#allocation2 + $0x1c] sm:$0xf]
        %v212 = vld [vmem:[%s178] sm:$0xff]
        %v213 = vld [vmem:[%s178 + $0x8] sm:$0xff]
        %v214 = vld [vmem:[%s178 + $0x10] sm:$0xff]
        %v215 = vld [vmem:[%s178 + $0x18] sm:$0xff]
        %v216 = vld [vmem:[%s178 + $0x20] sm:$0xff]
        %v217 = vld [vmem:[%s178 + $0x28] sm:$0xff]
        %v218 = vld [vmem:[%s178 + $0x30] sm:$0xff]
        %v219 = vld [vmem:[%s178 + $0x38] sm:$0xff]
        %v220 = vld [vmem:[%s178 + $0x40] sm:$0xff]
        %v221 = vld [vmem:[%s178 + $0x48] sm:$0xff]
        %v222 = vld [vmem:[%s178 + $0x50] sm:$0xff]
        %v223 = vld [vmem:[%s178 + $0x58] sm:$0xff]
        %v224 = vld [vmem:[%s178 + $0x60] sm:$0xff]
        %v225 = vld [vmem:[%s178 + $0x68] sm:$0xff]
        %v226 = vld [vmem:[%s178 + $0x70] sm:$0xff]
        %v227 = vld [vmem:[%s178 + $0x78] sm:$0xff]
        %v236 = vunpack.c.l.b16 %v204
        %v237 = vunpack.c.l.b16 %v205
        %v238 = vunpack.c.l.b16 %v206
        %v239 = vunpack.c.l.b16 %v207
        %v240 = vunpack.c.l.b16 %v208
        %v241 = vunpack.c.l.b16 %v209
        %v242 = vunpack.c.l.b16 %v210
        %v243 = vunpack.c.l.b16 %v211
        %v244 = vpack.c.b16 %v237, %v236
        %v245 = vpack.c.b16 %v239, %v238
        %v246 = vpack.c.b16 %v241, %v240
        %v247 = vpack.c.b16 %v243, %v242
        %v268 = vunpack.c.l.b16 %v212
        %v269 = vunpack.c.h.b16 %v212
        %v270 = vunpack.c.l.b16 %v213
        %v271 = vunpack.c.h.b16 %v213
        %v272 = vunpack.c.l.b16 %v214
        %v273 = vunpack.c.h.b16 %v214
        %v274 = vunpack.c.l.b16 %v215
        %v275 = vunpack.c.h.b16 %v215
        %v276 = vunpack.c.l.b16 %v216
        %v277 = vunpack.c.h.b16 %v216
        %v278 = vunpack.c.l.b16 %v217
        %v279 = vunpack.c.h.b16 %v217
        %v280 = vunpack.c.l.b16 %v218
        %v281 = vunpack.c.h.b16 %v218
        %v282 = vunpack.c.l.b16 %v219
        %v283 = vunpack.c.h.b16 %v219
        %v284 = vunpack.c.l.b16 %v220
        %v285 = vunpack.c.h.b16 %v220
        %v286 = vunpack.c.l.b16 %v221
        %v287 = vunpack.c.h.b16 %v221
        %v288 = vunpack.c.l.b16 %v222
        %v289 = vunpack.c.h.b16 %v222
        %v290 = vunpack.c.l.b16 %v223
        %v291 = vunpack.c.h.b16 %v223
        %v292 = vunpack.c.l.b16 %v224
        %v293 = vunpack.c.h.b16 %v224
        %v294 = vunpack.c.l.b16 %v225
        %v295 = vunpack.c.h.b16 %v225
        %v296 = vunpack.c.l.b16 %v226
        %v297 = vunpack.c.h.b16 %v226
        %v298 = vunpack.c.l.b16 %v227
        %v299 = vunpack.c.h.b16 %v227
        %v300 = vpack.c.b16 %v270, %v268
        %v301 = vpack.c.b16 %v271, %v269
        %v302 = vpack.c.b16 %v274, %v272
        %v303 = vpack.c.b16 %v275, %v273
        %v304 = vpack.c.b16 %v278, %v276
        %v305 = vpack.c.b16 %v279, %v277
        %v306 = vpack.c.b16 %v282, %v280
        %v307 = vpack.c.b16 %v283, %v281
        %v308 = vpack.c.b16 %v286, %v284
        %v309 = vpack.c.b16 %v287, %v285
        %v310 = vpack.c.b16 %v290, %v288
        %v311 = vpack.c.b16 %v291, %v289
        %v312 = vpack.c.b16 %v294, %v292
        %v313 = vpack.c.b16 %v295, %v293
        %v314 = vpack.c.b16 %v298, %v296
        %v315 = vpack.c.b16 %v299, %v297
        %332 = vmatprep.subr.bf16.mxu0 %v315
        %333 = vmatpush1.bf16.msra.mxu0 %v314
        %334 = vmatprep.subr.bf16.mxu0 %v313
        %335 = vmatpush1.bf16.msra.mxu0 %v312
        %336 = vmatprep.subr.bf16.mxu0 %v311
        %337 = vmatpush1.bf16.msra.mxu0 %v310
        %338 = vmatprep.subr.bf16.mxu0 %v309
        %339 = vmatpush1.bf16.msra.mxu0 %v308
        %340 = vmatprep.subr.bf16.mxu0 %v307
        %341 = vmatpush1.bf16.msra.mxu0 %v306
        %342 = vmatprep.subr.bf16.mxu0 %v305
        %343 = vmatpush1.bf16.msra.mxu0 %v304
        %344 = vmatprep.subr.bf16.mxu0 %v303
        %345 = vmatpush1.bf16.msra.mxu0 %v302
        %346 = vmatprep.subr.bf16.mxu0 %v301
        %347 = vmatpush1.bf16.msra.mxu0 %v300
        %348 = vmatprep.subr.bf16.mxu0 0
        %349 = vmatpush2.bf16.msra.mxu0 0
        %350 = vmatprep.subr.bf16.mxu0 0
        %351 = vmatpush2.bf16.msra.mxu0 0
        %352 = vmatprep.subr.bf16.mxu0 0
        %353 = vmatpush2.bf16.msra.mxu0 0
        %354 = vmatprep.subr.bf16.mxu0 0
        %355 = vmatpush2.bf16.msra.mxu0 0
        %356 = vmatprep.subr.bf16.mxu0 0
        %357 = vmatpush2.bf16.msra.mxu0 0
        %358 = vmatprep.subr.bf16.mxu0 0
        %359 = vmatpush2.bf16.msra.mxu0 0
        %360 = vmatprep.subr.bf16.mxu0 0
        %361 = vmatpush2.bf16.msra.mxu0 0
        %362 = vmatprep.subr.bf16.mxu0 0
        %363 = vmatpush2.bf16.msra.mxu0 0
        %364 = vmatprep.mubr.bf16.mxu0 0
        %365 = vmatmul.mubr.bf16.gmra.mxu0 %v244
        %v366 = vpop.f32.mrf.mxu0
        %v367 = vadd.f32 0.0, %v366
        %v368 = vpop.f32.mrf.mxu0
        %v369 = vadd.f32 0.0, %v368
        %v370 = vpop.f32.mrf.mxu0
        %v371 = vadd.f32 0.0, %v370
        %v372 = vpop.f32.mrf.mxu0
        %v373 = vadd.f32 0.0, %v372
        %374 = vmatprep.mubr.bf16.mxu0 0
        %375 = vmatmul.mubr.bf16.gmra.mxu0 %v245
        %v376 = vpop.f32.mrf.mxu0
        %v377 = vadd.f32 0.0, %v376
        %v378 = vpop.f32.mrf.mxu0
        %v379 = vadd.f32 0.0, %v378
        %v380 = vpop.f32.mrf.mxu0
        %v381 = vadd.f32 0.0, %v380
        %v382 = vpop.f32.mrf.mxu0
        %v383 = vadd.f32 0.0, %v382
        %384 = vmatprep.mubr.bf16.mxu0 0
        %385 = vmatmul.mubr.bf16.gmra.mxu0 %v246
        %v386 = vpop.f32.mrf.mxu0
        %v387 = vadd.f32 0.0, %v386
        %v388 = vpop.f32.mrf.mxu0
        %v389 = vadd.f32 0.0, %v388
        %v390 = vpop.f32.mrf.mxu0
        %v391 = vadd.f32 0.0, %v390
        %v392 = vpop.f32.mrf.mxu0
        %v393 = vadd.f32 0.0, %v392
        %394 = vmatprep.mubr.bf16.mxu0 0
        %395 = vmatmul.mubr.bf16.gmra.mxu0 %v247
        %v396 = vpop.f32.mrf.mxu0
        %v397 = vadd.f32 0.0, %v396
        %v398 = vpop.f32.mrf.mxu0
        %v399 = vadd.f32 0.0, %v398
        %v400 = vpop.f32.mrf.mxu0
        %v401 = vadd.f32 0.0, %v400
        %v402 = vpop.f32.mrf.mxu0
        %v403 = vadd.f32 0.0, %v402
        %404 = vdwg.mxu0
        %405 = vst [vmem:[%s198] sm:$0xff] %v367
        %406 = vst [vmem:[%s198 + $0x8] sm:$0xff] %v369
        %407 = vst [vmem:[%s198 + $0x10] sm:$0xff] %v371
        %408 = vst [vmem:[%s198 + $0x18] sm:$0xff] %v373
        %409 = vst [vmem:[%s198 + $0x20] sm:$0xff] %v377
        %410 = vst [vmem:[%s198 + $0x28] sm:$0xff] %v379
        %411 = vst [vmem:[%s198 + $0x30] sm:$0xff] %v381
        %412 = vst [vmem:[%s198 + $0x38] sm:$0xff] %v383
        %413 = vst [vmem:[%s198 + $0x40] sm:$0xff] %v387
        %414 = vst [vmem:[%s198 + $0x48] sm:$0xff] %v389
        %415 = vst [vmem:[%s198 + $0x50] sm:$0xff] %v391
        %416 = vst [vmem:[%s198 + $0x58] sm:$0xff] %v393
        %417 = vst [vmem:[%s198 + $0x60] sm:$0xff] %v397
        %418 = vst [vmem:[%s198 + $0x68] sm:$0xff] %v399
        %419 = vst [vmem:[%s198 + $0x70] sm:$0xff] %v401
        %420 = vst [vmem:[%s198 + $0x78] sm:$0xff] %v403
        %s421 = sand.u32 %s94, 1
        %s422 = scalar_lea.sflag [#allocation4], %s421
        %s423 = sand.u32 %s94, 1
        %s424 = smul.addr %s423, 128
        %s425 = scalar_lea.vmem [#allocation7], %s424
        // Predicated region
        $region37: #{tpu_custom_call.1} parent=27 // pred_check
          %p426 = pneg %p104
        $region38: #{tpu_custom_call.1} parent=27 // pred_check_branch
          %428 = sbr.rel (%p426) target = $region40
        $region39: #{tpu_custom_call.1} parent=27 // pred_region
          %s429 = smul.u32 8, %s24
          %s430 = smul.u32 2, %s25
          %s432 = ssub.s32 2048, 2048
          %433 = vsyncadd %s422, %s432
          %s434 = smul.addr %s429, 4
          %s435 = sadd.s32 %s430, %s434
          %s436 = smul.addr %s435, 128
          %s437 = scalar_lea.hbm %s2, %s436
          %s438 = sshll.u32 %s425, 4
          %s439 = int_to_ptr.vmem [resolvable:$true] %s438
          %444 = dma.vmem_to_hbm [thread:$0]  %s439, 2048, %s437, %s422, 256, 512, 16
        $region40: #{tpu_custom_call.1} parent=27 // pred_fallthru
          _
      $region28: #{tpu_custom_call.1} parent=5 // pred_fallthru
        _
      %p445 = scmp.le.s32.totalorder 2, %s15
      // Predicated region
      $region41: #{tpu_custom_call.1} parent=5 // pred_check
        %p446 = pneg %p445
      $region42: #{tpu_custom_call.1} parent=5 // pred_check_branch
        %448 = sbr.rel (%p446) target = $region44
      $region43: #{tpu_custom_call.1} parent=5 // pred_region
        %s449 = ssub.s32 %s15, 2
        // Predicated region
        $region45: #{tpu_custom_call.1} parent=43 // pred_check
          %p450 = pneg %p110
        $region46: #{tpu_custom_call.1} parent=43 // pred_check_branch
          %452 = sbr.rel (%p450) target = $region48
        $region47: #{tpu_custom_call.1} parent=43 // pred_region
          %s453 = sand.u32 %s95, 1
          %s454 = scalar_lea.sflag [#allocation4], %s453
          %s455 = sand.u32 %s95, 1
          %s456 = smul.addr %s455, 128
          %s457 = scalar_lea.vmem [#allocation7], %s456
          %458 = dma.done %s454, 2048
        $region48: #{tpu_custom_call.1} parent=43 // pred_fallthru
          _
      $region44: #{tpu_custom_call.1} parent=5 // pred_fallthru
        _
    $region6: #{tpu_custom_call.1} parent=1 // loop_footer
      %s19 = sadd.s32 1, %s15
    $region7: #{tpu_custom_call.1} parent=1 // loop_footer_branch
      %14 = sbr.rel target = $region3
    $region8: #{tpu_custom_call.1} parent=1 // loop_exit
      _
    %459 = vsyncpa [#allocation3], 1
    %s460 = scalar_lea.sflag [#allocation3], 1
    %461 = vsyncpa %s460, 1
    %462 = vsyncpa [#allocation6], 1
    %s463 = scalar_lea.sflag [#allocation6], 1
    %464 = vsyncpa %s463, 1
    %465 = vsyncpa [#allocation4], 1
    %s466 = scalar_lea.sflag [#allocation4], 1
    %467 = vsyncpa %s466, 1

</llo_original>
